<compile_context>
chip_gen: v7x
topology: tpu7x:2x2x1
jax: 0.10.0
libtpu: 0.0.40
codegen_flags: <defaults>
</compile_context>

<pallas_src>
import functools

import numpy as np
import jax
import jax.numpy as jnp
from jax import lax
from jax.experimental import pallas as pl
from jax.experimental.pallas import tpu as pltpu


# --------------------------------------------------------------------------- #
# Pallas kernel: q/k projections + masked cosine-similarity + text-axis max
# --------------------------------------------------------------------------- #
def _router_scores_kernel(v_ref, t_ref, wq_ref, wk_ref, mask_ref, scores_ref, *,
                          inv_temp, matmul_dtype):
    eps = 1e-8
    eps_sq = eps * eps
    f32 = jnp.float32
    mm_dims = (((1,), (1,)), ((), ()))      # x @ W^T  (contract dim-1 with dim-1)

    # In-kernel casts (free VPU filler) — no wrapper-side convert/transpose ops.
    v = v_ref[...].astype(matmul_dtype)     # (L_v, D)
    t = t_ref[...].astype(matmul_dtype)     # (L_t, D)
    wq = wq_ref[...].astype(matmul_dtype)   # (D, D) torch layout (out, in)
    wk = wk_ref[...].astype(matmul_dtype)   # (D, D)

    # Projections on the MXU: F.linear(x, W) == x @ W^T (transposed-rhs matmul).
    q = lax.dot_general(v, wq, mm_dims, preferred_element_type=f32)   # (L_v, D)
    k = lax.dot_general(t, wk, mm_dims, preferred_element_type=f32)   # (L_t, D)

    # Normalise k rows and fold the attention mask into the per-row scale:
    # a zeroed k_hat row gives sim == 0 exactly == masked_fill(0.0).
    k_ss = jnp.sum(k * k, axis=-1, keepdims=True)                     # (L_t, 1)
    inv_kn = lax.rsqrt(jnp.maximum(k_ss, eps_sq)) * mask_ref[...]     # (L_t, 1)
    k_hat = (k * inv_kn).astype(matmul_dtype)                         # (L_t, D)

    # sim[j, i] = k_hat_j . q_i : vision axis on lanes (lane-dense), q left
    # UN-normalised — 1/||q|| > 0 commutes with the max over the text axis.
    sim = lax.dot_general(k_hat, q.astype(matmul_dtype), mm_dims,
                          preferred_element_type=f32)                 # (L_t, L_v)
    m = jnp.max(sim, axis=0, keepdims=True)                           # (1, L_v)

    # 1/max(||q_i||, eps) as a lane-dense (1, L_v) row, built on the MXU
    # (ones(1,D) @ (q*q)^T) — no XLU transpose of an (L_v, 1) column needed.
    q_sq = q * q                                                      # f32
    ones_row = jnp.ones((1, q_sq.shape[-1]), f32)
    q_ss_row = lax.dot_general(ones_row, q_sq, mm_dims,
                               preferred_element_type=f32)            # (1, L_v)
    inv_qn_row = lax.rsqrt(jnp.maximum(q_ss_row, eps_sq))             # (1, L_v)

    # scores = max_over_text(cos_sim) / temperature ; dense (1, L_v) store.
    scores_ref[...] = m * inv_qn_row * inv_temp


def router_scores(vision_feature, text_embed, wq, wk, mask_col, *,
                  inv_temperature=1.0, matmul_dtype=jnp.bfloat16):
    """Per-vision-token max masked cosine similarity (scaled by 1/temperature)."""
    L_v, _ = vision_feature.shape

    kernel = functools.partial(_router_scores_kernel,
                               inv_temp=float(inv_temperature),
                               matmul_dtype=matmul_dtype)

    vmem = pltpu.MemorySpace.VMEM
    scores_row = pl.pallas_call(
        kernel,
        out_shape=jax.ShapeDtypeStruct((1, L_v), jnp.float32),
        in_specs=[
            pl.BlockSpec(memory_space=vmem),   # vision_feature (L_v, D)
            pl.BlockSpec(memory_space=vmem),   # text_embed     (L_t, D)
            pl.BlockSpec(memory_space=vmem),   # Wq             (D, D)
            pl.BlockSpec(memory_space=vmem),   # Wk             (D, D)
            pl.BlockSpec(memory_space=vmem),   # mask column    (L_t, 1)
        ],
        out_specs=pl.BlockSpec(memory_space=vmem),
    )(vision_feature, text_embed, wq, wk, mask_col)
    return scores_row[0]                       # (L_v,)


# --------------------------------------------------------------------------- #
# Static neighbour table (CosSimRouter_pad.get_neighbor_indices, vectorised)
# --------------------------------------------------------------------------- #
def _build_neighbor_table(num_tokens, grid_size, padding_size):
    idx = np.arange(num_tokens)
    coords = np.stack([idx // grid_size, idx % grid_size], axis=1)              # (L_v, 2)
    offsets = np.array([[i, j]
                        for i in range(-padding_size, padding_size + 1)
                        for j in range(-padding_size, padding_size + 1)
                        if not (i == 0 and j == 0)], dtype=np.int64)            # (K, 2)
    nb = coords[:, None, :] + offsets[None, :, :]                               # (L_v, K, 2)
    nb = np.clip(nb, 0, grid_size - 1)
    return jnp.asarray(nb[:, :, 0] * grid_size + nb[:, :, 1], dtype=jnp.int32)  # (L_v, K)


# --------------------------------------------------------------------------- #
# Jitted tail: softmax / sort / cumsum threshold / neighbour padding, all with
# static shapes. Returns a padded gather plus the dynamic count.
# --------------------------------------------------------------------------- #
@functools.partial(
    jax.jit,
    static_argnames=("gamma", "temperature", "noise_std", "padding_size", "matmul_dtype"))
def _router_select(vision_feature, text_embed, attention_mask, wq, wk,
                   neighbor_table, noise_key, *, gamma, temperature, noise_std,
                   padding_size, matmul_dtype):
    L_v = vision_feature.shape[0]
    L_t = text_embed.shape[0]

    # Tiny (L_t,) bool -> (L_t, 1) f32 column; fused by XLA, negligible next to
    # the previously-removed weight transposes / feature casts.
    mask_col = attention_mask.astype(jnp.float32).reshape(L_t, 1)

    scores_scaled = router_scores(
        vision_feature, text_embed, wq, wk, mask_col,
        inv_temperature=1.0 / temperature, matmul_dtype=matmul_dtype)           # (L_v,)

    if noise_std > 0.0:
        # softmax((scores + noise)/T) == softmax(scores/T + noise/T)
        noise = jax.random.normal(noise_key, (L_v,), jnp.float32) * (noise_std / temperature)
        scores_scaled = scores_scaled + noise

    probs = jax.nn.softmax(scores_scaled, axis=0)          # nn.Softmax(dim=0)
    order = jnp.argsort(-probs)                            # descending sort indices
    cum = jnp.cumsum(probs[order])
    count = jnp.sum(cum <= gamma).astype(jnp.int32)        # threshold_index

    if padding_size > 0:
        # boolean mask of initially-selected tokens
        selected_mask = jnp.zeros((L_v,), jnp.bool_).at[order].set(jnp.arange(L_v) < count)
        # scatter the clamped neighbours of every selected token (== torch.unique of
        # the flattened neighbour grid)
        vals = jnp.broadcast_to(selected_mask.astype(jnp.int32)[:, None],
                                neighbor_table.shape)
        hits = jnp.zeros((L_v,), jnp.int32).at[neighbor_table].add(vals)
        final_mask = hits > 0
        # ascending index order == torch.unique's sorted output; L_v is a sentinel
        gather_idx = jnp.sort(jnp.where(final_mask, jnp.arange(L_v), L_v))
        out_count = jnp.sum(final_mask).astype(jnp.int32)
    else:
        gather_idx = order                                  # descending-score order
        out_count = count

    gathered = vision_feature[jnp.clip(gather_idx, 0, L_v - 1)]   # (L_v, D) static shape
    return gathered, out_count


# --------------------------------------------------------------------------- #
# Public forward (matches CosSimRouter_pad.forward with q/k projection weights)
# --------------------------------------------------------------------------- #
def cos_sim_router_pad_forward(vision_feature, text_embed, attention_mask, wq, wk, *,
                               gamma=0.07, noise_std=0.0, temperature=0.05, top_k=0,
                               padding_size=1, noise_key=None,
                               matmul_dtype=jnp.bfloat16):
    if top_k != 0:
        # TODO(synk): top_k > 0 re-ranking branch (cosine-sim topk weighted sum) not
        # exercised with the module's default top_k=0; would need a second Pallas kernel.
        raise NotImplementedError("top_k > 0 branch not implemented")

    grid_size = 24                     # hard-coded in the reference forward()
    L_v = vision_feature.shape[0]

    if padding_size > 0:
        neighbor_table = _build_neighbor_table(L_v, grid_size, padding_size)
    else:
        neighbor_table = jnp.zeros((1, 1), jnp.int32)       # unused placeholder

    if noise_std > 0.0 and noise_key is None:
        noise_key = jax.random.PRNGKey(0)

    gathered, out_count = _router_select(
        vision_feature, text_embed, attention_mask, wq, wk, neighbor_table, noise_key,
        gamma=float(gamma), temperature=float(temperature), noise_std=float(noise_std),
        padding_size=int(padding_size), matmul_dtype=matmul_dtype)

    # Single device->host sync: the PyTorch module returns a dynamically-sized tensor.
    n = int(out_count)
    return gathered[:n]


if __name__ == "__main__":
    key = jax.random.PRNGKey(0)
    k1, k2, k3, k4 = jax.random.split(key, 4)

    # 576 = 24 * 24 vision patches (grid_size=24 is hard-coded in the module forward).
    L_v, L_t, D = 576, 32, 64
    vision_feature = jax.random.normal(k1, (L_v, D), dtype=jnp.float32)
    text_embed = jax.random.normal(k2, (L_t, D), dtype=jnp.float32)
    # Deterministic synthetic q/k projection weights (torch shape: (D_out, D_in)).
    wq = jax.random.normal(k3, (D, D), dtype=jnp.float32) * 0.05
    wk = jax.random.normal(k4, (D, D), dtype=jnp.float32) * 0.05
    # Boolean attention mask over text tokens; last 8 positions are padding (False).
    attention_mask = jnp.arange(L_t) < (L_t - 8)

    out = cos_sim_router_pad_forward(
        vision_feature, text_embed, attention_mask, wq, wk,
        gamma=0.5, noise_std=0.0, temperature=0.05, top_k=0, padding_size=1)

    jax.block_until_ready(out)
    print("KERNEL_OK")
</pallas_src>

<mosaic_0001>
module attributes {stable_mosaic.version = 11 : i64} {
  func.func private @main(%arg0: i32) attributes {dimension_semantics = [#tpu.dimension_semantics<core_parallel>], iteration_bounds = array<i64: 2>, tpu.core_type = #tpu.core_type<sc_scalar_subcore>, window_params = []} {
    return
  }
}

module attributes {stable_mosaic.version = 11 : i64} {
  func.func private @main(%arg0: i32) attributes {dimension_semantics = [#tpu.dimension_semantics<core_parallel>], iteration_bounds = array<i64: 2>, tpu.core_type = #tpu.core_type<sc_scalar_subcore>, window_params = []} {
    return
  }
}

module attributes {stable_mosaic.version = 11 : i64} {
  func.func @_router_scores_kernel(%arg0: memref<576x64xf32, #tpu.memory_space<vmem>>, %arg1: memref<32x64xf32, #tpu.memory_space<vmem>>, %arg2: memref<64x64xf32, #tpu.memory_space<vmem>>, %arg3: memref<64x64xf32, #tpu.memory_space<vmem>>, %arg4: memref<32x1xf32, #tpu.memory_space<vmem>>, %arg5: memref<1x576xf32, #tpu.memory_space<vmem>>) attributes {dimension_semantics = [], scalar_prefetch = 0 : i64, scratch_operands = 0 : i64, tpu.core_type = #tpu.core_type<tc>} {
    %c0 = arith.constant 0 : index
    %c0_0 = arith.constant 0 : index
    %0 = vector.load %arg0[%c0, %c0_0] : memref<576x64xf32, #tpu.memory_space<vmem>>, vector<576x64xf32>
    %1 = arith.truncf %0 : vector<576x64xf32> to vector<576x64xbf16>
    %c0_1 = arith.constant 0 : index
    %c0_2 = arith.constant 0 : index
    %2 = vector.load %arg1[%c0_1, %c0_2] : memref<32x64xf32, #tpu.memory_space<vmem>>, vector<32x64xf32>
    %3 = arith.truncf %2 : vector<32x64xf32> to vector<32x64xbf16>
    %c0_3 = arith.constant 0 : index
    %c0_4 = arith.constant 0 : index
    %4 = vector.load %arg2[%c0_3, %c0_4] : memref<64x64xf32, #tpu.memory_space<vmem>>, vector<64x64xf32>
    %5 = arith.truncf %4 : vector<64x64xf32> to vector<64x64xbf16>
    %c0_5 = arith.constant 0 : index
    %c0_6 = arith.constant 0 : index
    %6 = vector.load %arg3[%c0_5, %c0_6] : memref<64x64xf32, #tpu.memory_space<vmem>>, vector<64x64xf32>
    %7 = arith.truncf %6 : vector<64x64xf32> to vector<64x64xbf16>
    %cst = arith.constant dense<0.000000e+00> : vector<576x64xf32>
    %8 = tpu.matmul %1, %5, %cst {dimension_numbers = #tpu.dot_dimension_numbers<[1], [1], [0], [0], [0, 0, 1, 0], [], []>} : vector<576x64xbf16>, vector<64x64xbf16>, vector<576x64xf32> -> vector<576x64xf32>
    %cst_7 = arith.constant dense<0.000000e+00> : vector<32x64xf32>
    %9 = tpu.matmul %3, %7, %cst_7 {dimension_numbers = #tpu.dot_dimension_numbers<[1], [1], [0], [0], [0, 0, 1, 0], [], []>} : vector<32x64xbf16>, vector<64x64xbf16>, vector<32x64xf32> -> vector<32x64xf32>
    %10 = arith.mulf %9, %9 : vector<32x64xf32>
    %cst_8 = arith.constant dense<0.000000e+00> : vector<32xf32>
    %11 = vector.multi_reduction <add>, %10, %cst_8 [1] : vector<32x64xf32> to vector<32xf32>
    %12 = vector.shape_cast %11 : vector<32xf32> to vector<32x1xf32>
    %cst_9 = arith.constant 1.000000e-16 : f32
    %13 = vector.broadcast %cst_9 : f32 to vector<32x1xf32>
    %14 = arith.maximumf %12, %13 : vector<32x1xf32>
    %15 = math.rsqrt %14 : vector<32x1xf32>
    %c0_10 = arith.constant 0 : index
    %c0_11 = arith.constant 0 : index
    %16 = vector.load %arg4[%c0_10, %c0_11] : memref<32x1xf32, #tpu.memory_space<vmem>>, vector<32x1xf32>
    %17 = arith.mulf %15, %16 : vector<32x1xf32>
    %18 = vector.broadcast %17 : vector<32x1xf32> to vector<32x64xf32>
    %19 = arith.mulf %9, %18 : vector<32x64xf32>
    %20 = arith.truncf %19 : vector<32x64xf32> to vector<32x64xbf16>
    %21 = arith.truncf %8 : vector<576x64xf32> to vector<576x64xbf16>
    %cst_12 = arith.constant dense<0.000000e+00> : vector<32x576xf32>
    %22 = tpu.matmul %20, %21, %cst_12 {dimension_numbers = #tpu.dot_dimension_numbers<[1], [1], [0], [0], [0, 0, 1, 0], [], []>} : vector<32x64xbf16>, vector<576x64xbf16>, vector<32x576xf32> -> vector<32x576xf32>
    %cst_13 = arith.constant dense<0xFF800000> : vector<576xf32>
    %23 = vector.multi_reduction <maximumf>, %22, %cst_13 [0] : vector<32x576xf32> to vector<576xf32>
    %24 = vector.shape_cast %23 : vector<576xf32> to vector<1x576xf32>
    %25 = arith.mulf %8, %8 : vector<576x64xf32>
    %cst_14 = arith.constant 1.000000e+00 : f32
    %26 = vector.broadcast %cst_14 : f32 to vector<1x64xf32>
    %cst_15 = arith.constant dense<0.000000e+00> : vector<1x576xf32>
    %27 = tpu.matmul %26, %25, %cst_15 {dimension_numbers = #tpu.dot_dimension_numbers<[1], [1], [0], [0], [0, 0, 1, 0], [], []>} : vector<1x64xf32>, vector<576x64xf32>, vector<1x576xf32> -> vector<1x576xf32>
    %cst_16 = arith.constant 1.000000e-16 : f32
    %28 = vector.broadcast %cst_16 : f32 to vector<1x576xf32>
    %29 = arith.maximumf %27, %28 : vector<1x576xf32>
    %30 = math.rsqrt %29 : vector<1x576xf32>
    %31 = arith.mulf %24, %30 : vector<1x576xf32>
    %cst_17 = arith.constant 2.000000e+01 : f32
    %32 = vector.broadcast %cst_17 : f32 to vector<1x576xf32>
    %33 = arith.mulf %31, %32 : vector<1x576xf32>
    %c0_18 = arith.constant 0 : index
    %c0_19 = arith.constant 0 : index
    %34 = vector.load %arg5[%c0_18, %c0_19] : memref<1x576xf32, #tpu.memory_space<vmem>>, vector<1x576xf32>
    tpu.vector_store %arg5[%c0_18, %c0_19], %33 {strides = array<i32>} : memref<1x576xf32, #tpu.memory_space<vmem>>, vector<1x576xf32>,
    return
  }
}

</mosaic_0001>

<llo_original>
// kernel: neg.1
$region0: #{neg.1}
  #allocation0 [shape = 's32[1]{0}', space=sflag, size = 0x4, scoped, tag = 'scoped memory for neg.1']
  %s0 = inlined_call_operand.vmem [shape: f32[576], index: 0, kind: input, shape index: {}]
  %s1 = inlined_call_operand.vmem [shape: f32[576], index: 1, kind: output, shape index: {}]
  %v2 = vld [vmem:[%s0] sm:$0x1f]
  %3 = xla_tuple %v2
  %4 = xla_tuple %3
  %v5 = vxor.u32 %v2, 2147483648
  %6 = xla_tuple %v5
  %7 = vst [vmem:[%s1] sm:$0xff] %v5

// kernel: _router_select.1
$region0: #{_router_select.1}
  #allocation0 [shape = 'u32[]', space=smem, size = 0x4, offset = 0x4, fixed_abs, tag = 'smem constant byte address 0x4 - core index']
  #allocation1 [shape = 'u32[144,128]{1,0:T(1,128)}', space=vmem, size = 0x12000, scoped, tag = 'internal scratch']
  %s0 = inlined_call_operand.vmem [shape: f32[576,64], index: 0, kind: input, shape index: {}]
  %s1 = inlined_call_operand.vmem [shape: f32[32,64], index: 1, kind: input, shape index: {}]
  %s2 = inlined_call_operand.vmem [shape: f32[64,64], index: 2, kind: input, shape index: {}]
  %s3 = inlined_call_operand.vmem [shape: f32[64,64], index: 3, kind: input, shape index: {}]
  %s4 = inlined_call_operand.vmem [shape: f32[32,1], index: 4, kind: input, shape index: {}]
  %s5 = inlined_call_operand.vmem [shape: f32[1,576], index: 5, kind: output, shape index: {}]
  %s6 = sld [smem:[#allocation0]]
  $region30: #{_router_select.1} parent=0
    _
  %s8 = ssub.s32 1, %s6
  %s9 = scalar_select 0, %s8, %s6
  // Predicated region
  $region2: #{_router_select.1} parent=0 // pred_check
    _
  $region3: #{_router_select.1} parent=0 // pred_check_branch
    %11 = sbr.rel (0) target = $region5
  $region4: #{_router_select.1} parent=0 // pred_region
    _
  $region5: #{_router_select.1} parent=0 // pred_fallthru
    _
  // Predicated region
  $region6: #{_router_select.1} parent=0 // pred_check
    _
  $region7: #{_router_select.1} parent=0 // pred_check_branch
    %13 = sbr.rel (0) target = $region9
  $region8: #{_router_select.1} parent=0 // pred_region
    _
  $region9: #{_router_select.1} parent=0 // pred_fallthru
    _
  // Predicated region
  $region10: #{_router_select.1} parent=0 // pred_check
    _
  $region11: #{_router_select.1} parent=0 // pred_check_branch
    %15 = sbr.rel (0) target = $region13
  $region12: #{_router_select.1} parent=0 // pred_region
    _
  $region13: #{_router_select.1} parent=0 // pred_fallthru
    _
  // Predicated region
  $region14: #{_router_select.1} parent=0 // pred_check
    _
  $region15: #{_router_select.1} parent=0 // pred_check_branch
    %17 = sbr.rel (0) target = $region17
  $region16: #{_router_select.1} parent=0 // pred_region
    _
  $region17: #{_router_select.1} parent=0 // pred_fallthru
    _
  // Predicated region
  $region18: #{_router_select.1} parent=0 // pred_check
    _
  $region19: #{_router_select.1} parent=0 // pred_check_branch
    %19 = sbr.rel (0) target = $region21
  $region20: #{_router_select.1} parent=0 // pred_region
    _
  $region21: #{_router_select.1} parent=0 // pred_fallthru
    _
  %v21 = vld [vmem:[%s0] sm:$0xff]
  %v22 = vld [vmem:[%s0 + $0x8] sm:$0xff]
  %v23 = vld [vmem:[%s0 + $0x10] sm:$0xff]
  %v24 = vld [vmem:[%s0 + $0x18] sm:$0xff]
  %v25 = vld [vmem:[%s0 + $0x20] sm:$0xff]
  %v26 = vld [vmem:[%s0 + $0x28] sm:$0xff]
  %v27 = vld [vmem:[%s0 + $0x30] sm:$0xff]
  %v28 = vld [vmem:[%s0 + $0x38] sm:$0xff]
  %v29 = vld [vmem:[%s0 + $0x40] sm:$0xff]
  %v30 = vld [vmem:[%s0 + $0x48] sm:$0xff]
  %v31 = vld [vmem:[%s0 + $0x50] sm:$0xff]
  %v32 = vld [vmem:[%s0 + $0x58] sm:$0xff]
  %v33 = vld [vmem:[%s0 + $0x60] sm:$0xff]
  %v34 = vld [vmem:[%s0 + $0x68] sm:$0xff]
  %v35 = vld [vmem:[%s0 + $0x70] sm:$0xff]
  %v36 = vld [vmem:[%s0 + $0x78] sm:$0xff]
  %v37 = vld [vmem:[%s0 + $0x80] sm:$0xff]
  %v38 = vld [vmem:[%s0 + $0x88] sm:$0xff]
  %v39 = vld [vmem:[%s0 + $0x90] sm:$0xff]
  %v40 = vld [vmem:[%s0 + $0x98] sm:$0xff]
  %v41 = vld [vmem:[%s0 + $0xa0] sm:$0xff]
  %v42 = vld [vmem:[%s0 + $0xa8] sm:$0xff]
  %v43 = vld [vmem:[%s0 + $0xb0] sm:$0xff]
  %v44 = vld [vmem:[%s0 + $0xb8] sm:$0xff]
  %v45 = vld [vmem:[%s0 + $0xc0] sm:$0xff]
  %v46 = vld [vmem:[%s0 + $0xc8] sm:$0xff]
  %v47 = vld [vmem:[%s0 + $0xd0] sm:$0xff]
  %v48 = vld [vmem:[%s0 + $0xd8] sm:$0xff]
  %v49 = vld [vmem:[%s0 + $0xe0] sm:$0xff]
  %v50 = vld [vmem:[%s0 + $0xe8] sm:$0xff]
  %v51 = vld [vmem:[%s0 + $0xf0] sm:$0xff]
  %v52 = vld [vmem:[%s0 + $0xf8] sm:$0xff]
  %v53 = vld [vmem:[%s0 + $0x100] sm:$0xff]
  %v54 = vld [vmem:[%s0 + $0x108] sm:$0xff]
  %v55 = vld [vmem:[%s0 + $0x110] sm:$0xff]
  %v56 = vld [vmem:[%s0 + $0x118] sm:$0xff]
  %v57 = vld [vmem:[%s0 + $0x120] sm:$0xff]
  %v58 = vld [vmem:[%s0 + $0x128] sm:$0xff]
  %v59 = vld [vmem:[%s0 + $0x130] sm:$0xff]
  %v60 = vld [vmem:[%s0 + $0x138] sm:$0xff]
  %v61 = vld [vmem:[%s0 + $0x140] sm:$0xff]
  %v62 = vld [vmem:[%s0 + $0x148] sm:$0xff]
  %v63 = vld [vmem:[%s0 + $0x150] sm:$0xff]
  %v64 = vld [vmem:[%s0 + $0x158] sm:$0xff]
  %v65 = vld [vmem:[%s0 + $0x160] sm:$0xff]
  %v66 = vld [vmem:[%s0 + $0x168] sm:$0xff]
  %v67 = vld [vmem:[%s0 + $0x170] sm:$0xff]
  %v68 = vld [vmem:[%s0 + $0x178] sm:$0xff]
  %v69 = vld [vmem:[%s0 + $0x180] sm:$0xff]
  %v70 = vld [vmem:[%s0 + $0x188] sm:$0xff]
  %v71 = vld [vmem:[%s0 + $0x190] sm:$0xff]
  %v72 = vld [vmem:[%s0 + $0x198] sm:$0xff]
  %v73 = vld [vmem:[%s0 + $0x1a0] sm:$0xff]
  %v74 = vld [vmem:[%s0 + $0x1a8] sm:$0xff]
  %v75 = vld [vmem:[%s0 + $0x1b0] sm:$0xff]
  %v76 = vld [vmem:[%s0 + $0x1b8] sm:$0xff]
  %v77 = vld [vmem:[%s0 + $0x1c0] sm:$0xff]
  %v78 = vld [vmem:[%s0 + $0x1c8] sm:$0xff]
  %v79 = vld [vmem:[%s0 + $0x1d0] sm:$0xff]
  %v80 = vld [vmem:[%s0 + $0x1d8] sm:$0xff]
  %v81 = vld [vmem:[%s0 + $0x1e0] sm:$0xff]
  %v82 = vld [vmem:[%s0 + $0x1e8] sm:$0xff]
  %v83 = vld [vmem:[%s0 + $0x1f0] sm:$0xff]
  %v84 = vld [vmem:[%s0 + $0x1f8] sm:$0xff]
  %v85 = vld [vmem:[%s0 + $0x200] sm:$0xff]
  %v86 = vld [vmem:[%s0 + $0x208] sm:$0xff]
  %v87 = vld [vmem:[%s0 + $0x210] sm:$0xff]
  %v88 = vld [vmem:[%s0 + $0x218] sm:$0xff]
  %v89 = vld [vmem:[%s0 + $0x220] sm:$0xff]
  %v90 = vld [vmem:[%s0 + $0x228] sm:$0xff]
  %v91 = vld [vmem:[%s0 + $0x230] sm:$0xff]
  %v92 = vld [vmem:[%s0 + $0x238] sm:$0xff]
  %v93 = vpack.c.bf16 %v22, %v21
  %v94 = vpack.c.bf16 %v24, %v23
  %v95 = vpack.c.bf16 %v26, %v25
  %v96 = vpack.c.bf16 %v28, %v27
  %v97 = vpack.c.bf16 %v30, %v29
  %v98 = vpack.c.bf16 %v32, %v31
  %v99 = vpack.c.bf16 %v34, %v33
  %v100 = vpack.c.bf16 %v36, %v35
  %v101 = vpack.c.bf16 %v38, %v37
  %v102 = vpack.c.bf16 %v40, %v39
  %v103 = vpack.c.bf16 %v42, %v41
  %v104 = vpack.c.bf16 %v44, %v43
  %v105 = vpack.c.bf16 %v46, %v45
  %v106 = vpack.c.bf16 %v48, %v47
  %v107 = vpack.c.bf16 %v50, %v49
  %v108 = vpack.c.bf16 %v52, %v51
  %v109 = vpack.c.bf16 %v54, %v53
  %v110 = vpack.c.bf16 %v56, %v55
  %v111 = vpack.c.bf16 %v58, %v57
  %v112 = vpack.c.bf16 %v60, %v59
  %v113 = vpack.c.bf16 %v62, %v61
  %v114 = vpack.c.bf16 %v64, %v63
  %v115 = vpack.c.bf16 %v66, %v65
  %v116 = vpack.c.bf16 %v68, %v67
  %v117 = vpack.c.bf16 %v70, %v69
  %v118 = vpack.c.bf16 %v72, %v71
  %v119 = vpack.c.bf16 %v74, %v73
  %v120 = vpack.c.bf16 %v76, %v75
  %v121 = vpack.c.bf16 %v78, %v77
  %v122 = vpack.c.bf16 %v80, %v79
  %v123 = vpack.c.bf16 %v82, %v81
  %v124 = vpack.c.bf16 %v84, %v83
  %v125 = vpack.c.bf16 %v86, %v85
  %v126 = vpack.c.bf16 %v88, %v87
  %v127 = vpack.c.bf16 %v90, %v89
  %v128 = vpack.c.bf16 %v92, %v91
  %v129 = vld [vmem:[%s1] sm:$0xff]
  %v130 = vld [vmem:[%s1 + $0x8] sm:$0xff]
  %v131 = vld [vmem:[%s1 + $0x10] sm:$0xff]
  %v132 = vld [vmem:[%s1 + $0x18] sm:$0xff]
  %v133 = vpack.c.bf16 %v130, %v129
  %v134 = vpack.c.bf16 %v132, %v131
  %v135 = vld [vmem:[%s2] sm:$0xff]
  %v136 = vld [vmem:[%s2 + $0x8] sm:$0xff]
  %v137 = vld [vmem:[%s2 + $0x10] sm:$0xff]
  %v138 = vld [vmem:[%s2 + $0x18] sm:$0xff]
  %v139 = vld [vmem:[%s2 + $0x20] sm:$0xff]
  %v140 = vld [vmem:[%s2 + $0x28] sm:$0xff]
  %v141 = vld [vmem:[%s2 + $0x30] sm:$0xff]
  %v142 = vld [vmem:[%s2 + $0x38] sm:$0xff]
  %v143 = vpack.c.bf16 %v136, %v135
  %v144 = vpack.c.bf16 %v138, %v137
  %v145 = vpack.c.bf16 %v140, %v139
  %v146 = vpack.c.bf16 %v142, %v141
  %v147 = vld [vmem:[%s3] sm:$0xff]
  %v148 = vld [vmem:[%s3 + $0x8] sm:$0xff]
  %v149 = vld [vmem:[%s3 + $0x10] sm:$0xff]
  %v150 = vld [vmem:[%s3 + $0x18] sm:$0xff]
  %v151 = vld [vmem:[%s3 + $0x20] sm:$0xff]
  %v152 = vld [vmem:[%s3 + $0x28] sm:$0xff]
  %v153 = vld [vmem:[%s3 + $0x30] sm:$0xff]
  %v154 = vld [vmem:[%s3 + $0x38] sm:$0xff]
  %v155 = vpack.c.bf16 %v148, %v147
  %v156 = vpack.c.bf16 %v150, %v149
  %v157 = vpack.c.bf16 %v152, %v151
  %v158 = vpack.c.bf16 %v154, %v153
  %vm159 = vcmask 523264
  %v161 = vsel %vm159, %v93, 0
  %v164 = vsel %vm159, %v94, 0
  %v167 = vsel %vm159, %v95, 0
  %v170 = vsel %vm159, %v96, 0
  %v173 = vsel %vm159, %v97, 0
  %v176 = vsel %vm159, %v98, 0
  %v179 = vsel %vm159, %v99, 0
  %v182 = vsel %vm159, %v100, 0
  %v185 = vsel %vm159, %v101, 0
  %v188 = vsel %vm159, %v102, 0
  %v191 = vsel %vm159, %v103, 0
  %v194 = vsel %vm159, %v104, 0
  %v197 = vsel %vm159, %v105, 0
  %v200 = vsel %vm159, %v106, 0
  %v203 = vsel %vm159, %v107, 0
  %v206 = vsel %vm159, %v108, 0
  %v209 = vsel %vm159, %v109, 0
  %v212 = vsel %vm159, %v110, 0
  %v215 = vsel %vm159, %v111, 0
  %v218 = vsel %vm159, %v112, 0
  %v221 = vsel %vm159, %v113, 0
  %v224 = vsel %vm159, %v114, 0
  %v227 = vsel %vm159, %v115, 0
  %v230 = vsel %vm159, %v116, 0
  %v233 = vsel %vm159, %v117, 0
  %v236 = vsel %vm159, %v118, 0
  %v239 = vsel %vm159, %v119, 0
  %v242 = vsel %vm159, %v120, 0
  %v245 = vsel %vm159, %v121, 0
  %v248 = vsel %vm159, %v122, 0
  %v251 = vsel %vm159, %v123, 0
  %v254 = vsel %vm159, %v124, 0
  %v257 = vsel %vm159, %v125, 0
  %v260 = vsel %vm159, %v126, 0
  %v263 = vsel %vm159, %v127, 0
  %v266 = vsel %vm159, %v128, 0
  %v269 = vsel %vm159, %v143, 0
  %v272 = vsel %vm159, %v144, 0
  %v275 = vsel %vm159, %v145, 0
  %v278 = vsel %vm159, %v146, 0
  %280 = vmatprep.subr.bf16.mxu0 0
  %281 = vmatpush1.bf16.xpose.msra.mxu0 %v269
  %282 = vmatprep.subr.bf16.mxu0 0
  %283 = vmatpush1.bf16.xpose.msra.mxu0 %v272
  %284 = vmatprep.subr.bf16.mxu0 0
  %285 = vmatpush1.bf16.xpose.msra.mxu0 %v275
  %286 = vmatprep.subr.bf16.mxu0 0
  %287 = vmatpush1.bf16.xpose.msra.mxu0 %v278
  %288 = vmatprep.subr.bf16.mxu0 0
  %289 = vmatpush1.bf16.xpose.msra.mxu0 0
  %290 = vmatprep.subr.bf16.mxu0 0
  %291 = vmatpush1.bf16.xpose.msra.mxu0 0
  %292 = vmatprep.subr.bf16.mxu0 0
  %293 = vmatpush1.bf16.xpose.msra.mxu0 0
  %294 = vmatprep.subr.bf16.mxu0 0
  %295 = vmatpush1.bf16.xpose.msra.mxu0 0
  %296 = vmatprep.subr.bf16.mxu0 0
  %297 = vmatpush1.bf16.xpose.msra.mxu0 0
  %298 = vmatprep.subr.bf16.mxu0 0
  %299 = vmatpush1.bf16.xpose.msra.mxu0 0
  %300 = vmatprep.subr.bf16.mxu0 0
  %301 = vmatpush1.bf16.xpose.msra.mxu0 0
  %302 = vmatprep.subr.bf16.mxu0 0
  %303 = vmatpush1.bf16.xpose.msra.mxu0 0
  %304 = vmatprep.subr.bf16.mxu0 0
  %305 = vmatpush1.bf16.xpose.msra.mxu0 0
  %306 = vmatprep.subr.bf16.mxu0 0
  %307 = vmatpush1.bf16.xpose.msra.mxu0 0
  %308 = vmatprep.subr.bf16.mxu0 0
  %309 = vmatpush1.bf16.xpose.msra.mxu0 0
  %310 = vmatprep.subr.bf16.mxu0 0
  %311 = vmatpush1.bf16.xpose.msra.mxu0 0
  %312 = vmatprep.mubr.bf16.mxu0 0
  %313 = vmatmul.mubr.bf16.gmra.mrb[0].mxu0 %v161
  %v314 = vpop.f32.mrb[0].mxu0
  %v315 = vadd.f32 0.0, %v314
  %v316 = vpop.f32.mrb[0].mxu0
  %v317 = vpop.f32.mrb[0].mxu0
  %v318 = vadd.f32 0.0, %v317
  %v319 = vpop.f32.mrb[0].mxu0
  %320 = vmatprep.mubr.bf16.mxu0 0
  %321 = vmatmul.mubr.bf16.gmra.mrb[0].mxu0 %v164
  %v322 = vpop.f32.mrb[0].mxu0
  %v323 = vadd.f32 0.0, %v322
  %v324 = vpop.f32.mrb[0].mxu0
  %v325 = vpop.f32.mrb[0].mxu0
  %v326 = vadd.f32 0.0, %v325
  %v327 = vpop.f32.mrb[0].mxu0
  %328 = vmatprep.mubr.bf16.mxu0 0
  %329 = vmatmul.mubr.bf16.gmra.mrb[0].mxu0 %v167
  %v330 = vpop.f32.mrb[0].mxu0
  %v331 = vadd.f32 0.0, %v330
  %v332 = vpop.f32.mrb[0].mxu0
  %v333 = vpop.f32.mrb[0].mxu0
  %v334 = vadd.f32 0.0, %v333
  %v335 = vpop.f32.mrb[0].mxu0
  %336 = vmatprep.mubr.bf16.mxu0 0
  %337 = vmatmul.mubr.bf16.gmra.mrb[0].mxu0 %v170
  %v338 = vpop.f32.mrb[0].mxu0
  %v339 = vadd.f32 0.0, %v338
  %v340 = vpop.f32.mrb[0].mxu0
  %v341 = vpop.f32.mrb[0].mxu0
  %v342 = vadd.f32 0.0, %v341
  %v343 = vpop.f32.mrb[0].mxu0
  %344 = vmatprep.mubr.bf16.mxu0 0
  %345 = vmatmul.mubr.bf16.gmra.mrb[0].mxu0 %v173
  %v346 = vpop.f32.mrb[0].mxu0
  %v347 = vadd.f32 0.0, %v346
  %v348 = vpop.f32.mrb[0].mxu0
  %v349 = vpop.f32.mrb[0].mxu0
  %v350 = vadd.f32 0.0, %v349
  %v351 = vpop.f32.mrb[0].mxu0
  %352 = vmatprep.mubr.bf16.mxu0 0
  %353 = vmatmul.mubr.bf16.gmra.mrb[0].mxu0 %v176
  %v354 = vpop.f32.mrb[0].mxu0
  %v355 = vadd.f32 0.0, %v354
  %v356 = vpop.f32.mrb[0].mxu0
  %v357 = vpop.f32.mrb[0].mxu0
  %v358 = vadd.f32 0.0, %v357
  %v359 = vpop.f32.mrb[0].mxu0
  %360 = vmatprep.mubr.bf16.mxu0 0
  %361 = vmatmul.mubr.bf16.gmra.mrb[0].mxu0 %v179
  %v362 = vpop.f32.mrb[0].mxu0
  %v363 = vadd.f32 0.0, %v362
  %v364 = vpop.f32.mrb[0].mxu0
  %v365 = vpop.f32.mrb[0].mxu0
  %v366 = vadd.f32 0.0, %v365
  %v367 = vpop.f32.mrb[0].mxu0
  %368 = vmatprep.mubr.bf16.mxu0 0
  %369 = vmatmul.mubr.bf16.gmra.mrb[0].mxu0 %v182
  %v370 = vpop.f32.mrb[0].mxu0
  %v371 = vadd.f32 0.0, %v370
  %v372 = vpop.f32.mrb[0].mxu0
  %v373 = vpop.f32.mrb[0].mxu0
  %v374 = vadd.f32 0.0, %v373
  %v375 = vpop.f32.mrb[0].mxu0
  %376 = vmatprep.mubr.bf16.mxu0 0
  %377 = vmatmul.mubr.bf16.gmra.mrb[0].mxu0 %v185
  %v378 = vpop.f32.mrb[0].mxu0
  %v379 = vadd.f32 0.0, %v378
  %v380 = vpop.f32.mrb[0].mxu0
  %v381 = vpop.f32.mrb[0].mxu0
  %v382 = vadd.f32 0.0, %v381
  %v383 = vpop.f32.mrb[0].mxu0
  %384 = vmatprep.mubr.bf16.mxu0 0
  %385 = vmatmul.mubr.bf16.gmra.mrb[0].mxu0 %v188
  %v386 = vpop.f32.mrb[0].mxu0
  %v387 = vadd.f32 0.0, %v386
  %v388 = vpop.f32.mrb[0].mxu0
  %v389 = vpop.f32.mrb[0].mxu0
  %v390 = vadd.f32 0.0, %v389
  %v391 = vpop.f32.mrb[0].mxu0
  %392 = vmatprep.mubr.bf16.mxu0 0
  %393 = vmatmul.mubr.bf16.gmra.mrb[0].mxu0 %v191
  %v394 = vpop.f32.mrb[0].mxu0
  %v395 = vadd.f32 0.0, %v394
  %v396 = vpop.f32.mrb[0].mxu0
  %v397 = vpop.f32.mrb[0].mxu0
  %v398 = vadd.f32 0.0, %v397
  %v399 = vpop.f32.mrb[0].mxu0
  %400 = vmatprep.mubr.bf16.mxu0 0
  %401 = vmatmul.mubr.bf16.gmra.mrb[0].mxu0 %v194
  %v402 = vpop.f32.mrb[0].mxu0
  %v403 = vadd.f32 0.0, %v402
  %v404 = vpop.f32.mrb[0].mxu0
  %v405 = vpop.f32.mrb[0].mxu0
  %v406 = vadd.f32 0.0, %v405
  %v407 = vpop.f32.mrb[0].mxu0
  %408 = vmatprep.mubr.bf16.mxu0 0
  %409 = vmatmul.mubr.bf16.gmra.mrb[0].mxu0 %v197
  %v410 = vpop.f32.mrb[0].mxu0
  %v411 = vadd.f32 0.0, %v410
  %v412 = vpop.f32.mrb[0].mxu0
  %v413 = vpop.f32.mrb[0].mxu0
  %v414 = vadd.f32 0.0, %v413
  %v415 = vpop.f32.mrb[0].mxu0
  %416 = vmatprep.mubr.bf16.mxu0 0
  %417 = vmatmul.mubr.bf16.gmra.mrb[0].mxu0 %v200
  %v418 = vpop.f32.mrb[0].mxu0
  %v419 = vadd.f32 0.0, %v418
  %v420 = vpop.f32.mrb[0].mxu0
  %v421 = vpop.f32.mrb[0].mxu0
  %v422 = vadd.f32 0.0, %v421
  %v423 = vpop.f32.mrb[0].mxu0
  %424 = vmatprep.mubr.bf16.mxu0 0
  %425 = vmatmul.mubr.bf16.gmra.mrb[0].mxu0 %v203
  %v426 = vpop.f32.mrb[0].mxu0
  %v427 = vadd.f32 0.0, %v426
  %v428 = vpop.f32.mrb[0].mxu0
  %v429 = vpop.f32.mrb[0].mxu0
  %v430 = vadd.f32 0.0, %v429
  %v431 = vpop.f32.mrb[0].mxu0
  %432 = vmatprep.mubr.bf16.mxu0 0
  %433 = vmatmul.mubr.bf16.gmra.mrb[0].mxu0 %v206
  %v434 = vpop.f32.mrb[0].mxu0
  %v435 = vadd.f32 0.0, %v434
  %v436 = vpop.f32.mrb[0].mxu0
  %v437 = vpop.f32.mrb[0].mxu0
  %v438 = vadd.f32 0.0, %v437
  %v439 = vpop.f32.mrb[0].mxu0
  %440 = vmatprep.mubr.bf16.mxu0 0
  %441 = vmatmul.mubr.bf16.gmra.mrb[0].mxu0 %v209
  %v442 = vpop.f32.mrb[0].mxu0
  %v443 = vadd.f32 0.0, %v442
  %v444 = vpop.f32.mrb[0].mxu0
  %v445 = vpop.f32.mrb[0].mxu0
  %v446 = vadd.f32 0.0, %v445
  %v447 = vpop.f32.mrb[0].mxu0
  %448 = vmatprep.mubr.bf16.mxu0 0
  %449 = vmatmul.mubr.bf16.gmra.mrb[0].mxu0 %v212
  %v450 = vpop.f32.mrb[0].mxu0
  %v451 = vadd.f32 0.0, %v450
  %v452 = vpop.f32.mrb[0].mxu0
  %v453 = vpop.f32.mrb[0].mxu0
  %v454 = vadd.f32 0.0, %v453
  %v455 = vpop.f32.mrb[0].mxu0
  %456 = vmatprep.mubr.bf16.mxu0 0
  %457 = vmatmul.mubr.bf16.gmra.mrb[0].mxu0 %v215
  %v458 = vpop.f32.mrb[0].mxu0
  %v459 = vadd.f32 0.0, %v458
  %v460 = vpop.f32.mrb[0].mxu0
  %v461 = vpop.f32.mrb[0].mxu0
  %v462 = vadd.f32 0.0, %v461
  %v463 = vpop.f32.mrb[0].mxu0
  %464 = vmatprep.mubr.bf16.mxu0 0
  %465 = vmatmul.mubr.bf16.gmra.mrb[0].mxu0 %v218
  %v466 = vpop.f32.mrb[0].mxu0
  %v467 = vadd.f32 0.0, %v466
  %v468 = vpop.f32.mrb[0].mxu0
  %v469 = vpop.f32.mrb[0].mxu0
  %v470 = vadd.f32 0.0, %v469
  %v471 = vpop.f32.mrb[0].mxu0
  %472 = vmatprep.mubr.bf16.mxu0 0
  %473 = vmatmul.mubr.bf16.gmra.mrb[0].mxu0 %v221
  %v474 = vpop.f32.mrb[0].mxu0
  %v475 = vadd.f32 0.0, %v474
  %v476 = vpop.f32.mrb[0].mxu0
  %v477 = vpop.f32.mrb[0].mxu0
  %v478 = vadd.f32 0.0, %v477
  %v479 = vpop.f32.mrb[0].mxu0
  %480 = vmatprep.mubr.bf16.mxu0 0
  %481 = vmatmul.mubr.bf16.gmra.mrb[0].mxu0 %v224
  %v482 = vpop.f32.mrb[0].mxu0
  %v483 = vadd.f32 0.0, %v482
  %v484 = vpop.f32.mrb[0].mxu0
  %v485 = vpop.f32.mrb[0].mxu0
  %v486 = vadd.f32 0.0, %v485
  %v487 = vpop.f32.mrb[0].mxu0
  %488 = vmatprep.mubr.bf16.mxu0 0
  %489 = vmatmul.mubr.bf16.gmra.mrb[0].mxu0 %v227
  %v490 = vpop.f32.mrb[0].mxu0
  %v491 = vadd.f32 0.0, %v490
  %v492 = vpop.f32.mrb[0].mxu0
  %v493 = vpop.f32.mrb[0].mxu0
  %v494 = vadd.f32 0.0, %v493
  %v495 = vpop.f32.mrb[0].mxu0
  %496 = vmatprep.mubr.bf16.mxu0 0
  %497 = vmatmul.mubr.bf16.gmra.mrb[0].mxu0 %v230
  %v498 = vpop.f32.mrb[0].mxu0
  %v499 = vadd.f32 0.0, %v498
  %v500 = vpop.f32.mrb[0].mxu0
  %v501 = vpop.f32.mrb[0].mxu0
  %v502 = vadd.f32 0.0, %v501
  %v503 = vpop.f32.mrb[0].mxu0
  %504 = vmatprep.mubr.bf16.mxu0 0
  %505 = vmatmul.mubr.bf16.gmra.mrb[0].mxu0 %v233
  %v506 = vpop.f32.mrb[0].mxu0
  %v507 = vadd.f32 0.0, %v506
  %v508 = vpop.f32.mrb[0].mxu0
  %v509 = vpop.f32.mrb[0].mxu0
  %v510 = vadd.f32 0.0, %v509
  %v511 = vpop.f32.mrb[0].mxu0
  %512 = vmatprep.mubr.bf16.mxu0 0
  %513 = vmatmul.mubr.bf16.gmra.mrb[0].mxu0 %v236
  %v514 = vpop.f32.mrb[0].mxu0
  %v515 = vadd.f32 0.0, %v514
  %v516 = vpop.f32.mrb[0].mxu0
  %v517 = vpop.f32.mrb[0].mxu0
  %v518 = vadd.f32 0.0, %v517
  %v519 = vpop.f32.mrb[0].mxu0
  %520 = vmatprep.mubr.bf16.mxu0 0
  %521 = vmatmul.mubr.bf16.gmra.mrb[0].mxu0 %v239
  %v522 = vpop.f32.mrb[0].mxu0
  %v523 = vadd.f32 0.0, %v522
  %v524 = vpop.f32.mrb[0].mxu0
  %v525 = vpop.f32.mrb[0].mxu0
  %v526 = vadd.f32 0.0, %v525
  %v527 = vpop.f32.mrb[0].mxu0
  %528 = vmatprep.mubr.bf16.mxu0 0
  %529 = vmatmul.mubr.bf16.gmra.mrb[0].mxu0 %v242
  %v530 = vpop.f32.mrb[0].mxu0
  %v531 = vadd.f32 0.0, %v530
  %v532 = vpop.f32.mrb[0].mxu0
  %v533 = vpop.f32.mrb[0].mxu0
  %v534 = vadd.f32 0.0, %v533
  %v535 = vpop.f32.mrb[0].mxu0
  %536 = vmatprep.mubr.bf16.mxu0 0
  %537 = vmatmul.mubr.bf16.gmra.mrb[0].mxu0 %v245
  %v538 = vpop.f32.mrb[0].mxu0
  %v539 = vadd.f32 0.0, %v538
  %v540 = vpop.f32.mrb[0].mxu0
  %v541 = vpop.f32.mrb[0].mxu0
  %v542 = vadd.f32 0.0, %v541
  %v543 = vpop.f32.mrb[0].mxu0
  %544 = vmatprep.mubr.bf16.mxu0 0
  %545 = vmatmul.mubr.bf16.gmra.mrb[0].mxu0 %v248
  %v546 = vpop.f32.mrb[0].mxu0
  %v547 = vadd.f32 0.0, %v546
  %v548 = vpop.f32.mrb[0].mxu0
  %v549 = vpop.f32.mrb[0].mxu0
  %v550 = vadd.f32 0.0, %v549
  %v551 = vpop.f32.mrb[0].mxu0
  %552 = vmatprep.mubr.bf16.mxu0 0
  %553 = vmatmul.mubr.bf16.gmra.mrb[0].mxu0 %v251
  %v554 = vpop.f32.mrb[0].mxu0
  %v555 = vadd.f32 0.0, %v554
  %v556 = vpop.f32.mrb[0].mxu0
  %v557 = vpop.f32.mrb[0].mxu0
  %v558 = vadd.f32 0.0, %v557
  %v559 = vpop.f32.mrb[0].mxu0
  %560 = vmatprep.mubr.bf16.mxu0 0
  %561 = vmatmul.mubr.bf16.gmra.mrb[0].mxu0 %v254
  %v562 = vpop.f32.mrb[0].mxu0
  %v563 = vadd.f32 0.0, %v562
  %v564 = vpop.f32.mrb[0].mxu0
  %v565 = vpop.f32.mrb[0].mxu0
  %v566 = vadd.f32 0.0, %v565
  %v567 = vpop.f32.mrb[0].mxu0
  %568 = vmatprep.mubr.bf16.mxu0 0
  %569 = vmatmul.mubr.bf16.gmra.mrb[0].mxu0 %v257
  %v570 = vpop.f32.mrb[0].mxu0
  %v571 = vadd.f32 0.0, %v570
  %v572 = vpop.f32.mrb[0].mxu0
  %v573 = vpop.f32.mrb[0].mxu0
  %v574 = vadd.f32 0.0, %v573
  %v575 = vpop.f32.mrb[0].mxu0
  %576 = vmatprep.mubr.bf16.mxu0 0
  %577 = vmatmul.mubr.bf16.gmra.mrb[0].mxu0 %v260
  %v578 = vpop.f32.mrb[0].mxu0
  %v579 = vadd.f32 0.0, %v578
  %v580 = vpop.f32.mrb[0].mxu0
  %v581 = vpop.f32.mrb[0].mxu0
  %v582 = vadd.f32 0.0, %v581
  %v583 = vpop.f32.mrb[0].mxu0
  %584 = vmatprep.mubr.bf16.mxu0 0
  %585 = vmatmul.mubr.bf16.gmra.mrb[0].mxu0 %v263
  %v586 = vpop.f32.mrb[0].mxu0
  %v587 = vadd.f32 0.0, %v586
  %v588 = vpop.f32.mrb[0].mxu0
  %v589 = vpop.f32.mrb[0].mxu0
  %v590 = vadd.f32 0.0, %v589
  %v591 = vpop.f32.mrb[0].mxu0
  %592 = vmatprep.mubr.bf16.mxu0 0
  %593 = vmatmul.mubr.bf16.gmra.mrb[0].mxu0 %v266
  %v594 = vpop.f32.mrb[0].mxu0
  %v595 = vadd.f32 0.0, %v594
  %v596 = vpop.f32.mrb[0].mxu0
  %v597 = vpop.f32.mrb[0].mxu0
  %v598 = vadd.f32 0.0, %v597
  %v599 = vpop.f32.mrb[0].mxu0
  %600 = vdwg.mxu0
  %v602 = vsel %vm159, %v133, 0
  %v605 = vsel %vm159, %v134, 0
  %v608 = vsel %vm159, %v155, 0
  %v611 = vsel %vm159, %v156, 0
  %v614 = vsel %vm159, %v157, 0
  %v617 = vsel %vm159, %v158, 0
  %619 = vmatprep.subr.bf16.mxu0 0
  %620 = vmatpush1.bf16.xpose.msra.mxu0 %v608
  %621 = vmatprep.subr.bf16.mxu0 0
  %622 = vmatpush1.bf16.xpose.msra.mxu0 %v611
  %623 = vmatprep.subr.bf16.mxu0 0
  %624 = vmatpush1.bf16.xpose.msra.mxu0 %v614
  %625 = vmatprep.subr.bf16.mxu0 0
  %626 = vmatpush1.bf16.xpose.msra.mxu0 %v617
  %627 = vmatprep.subr.bf16.mxu0 0
  %628 = vmatpush1.bf16.xpose.msra.mxu0 0
  %629 = vmatprep.subr.bf16.mxu0 0
  %630 = vmatpush1.bf16.xpose.msra.mxu0 0
  %631 = vmatprep.subr.bf16.mxu0 0
  %632 = vmatpush1.bf16.xpose.msra.mxu0 0
  %633 = vmatprep.subr.bf16.mxu0 0
  %634 = vmatpush1.bf16.xpose.msra.mxu0 0
  %635 = vmatprep.subr.bf16.mxu0 0
  %636 = vmatpush1.bf16.xpose.msra.mxu0 0
  %637 = vmatprep.subr.bf16.mxu0 0
  %638 = vmatpush1.bf16.xpose.msra.mxu0 0
  %639 = vmatprep.subr.bf16.mxu0 0
  %640 = vmatpush1.bf16.xpose.msra.mxu0 0
  %641 = vmatprep.subr.bf16.mxu0 0
  %642 = vmatpush1.bf16.xpose.msra.mxu0 0
  %643 = vmatprep.subr.bf16.mxu0 0
  %644 = vmatpush1.bf16.xpose.msra.mxu0 0
  %645 = vmatprep.subr.bf16.mxu0 0
  %646 = vmatpush1.bf16.xpose.msra.mxu0 0
  %647 = vmatprep.subr.bf16.mxu0 0
  %648 = vmatpush1.bf16.xpose.msra.mxu0 0
  %649 = vmatprep.subr.bf16.mxu0 0
  %650 = vmatpush1.bf16.xpose.msra.mxu0 0
  %651 = vmatprep.mubr.bf16.mxu0 0
  %652 = vmatmul.mubr.bf16.gmra.mrb[0].mxu0 %v602
  %v653 = vpop.f32.mrb[0].mxu0
  %v654 = vadd.f32 0.0, %v653
  %v655 = vpop.f32.mrb[0].mxu0
  %v656 = vpop.f32.mrb[0].mxu0
  %v657 = vadd.f32 0.0, %v656
  %v658 = vpop.f32.mrb[0].mxu0
  %659 = vmatprep.mubr.bf16.mxu0 0
  %660 = vmatmul.mubr.bf16.gmra.mrb[0].mxu0 %v605
  %v661 = vpop.f32.mrb[0].mxu0
  %v662 = vadd.f32 0.0, %v661
  %v663 = vpop.f32.mrb[0].mxu0
  %v664 = vpop.f32.mrb[0].mxu0
  %v665 = vadd.f32 0.0, %v664
  %v666 = vpop.f32.mrb[0].mxu0
  %667 = vdwg.mxu0
  %v668 = vmul.f32 %v654, %v654
  %v669 = vmul.f32 %v657, %v657
  %v670 = vmul.f32 %v662, %v662
  %v671 = vmul.f32 %v665, %v665
  %v672 = vsel %vm159, %v668, 0.0
  %673 = vadd.xlane.f32.xlu0 %v672
  %v674 = vpop.xlane.xlu0 %673
  %v675 = vsel %vm159, %v669, 0.0
  %676 = vadd.xlane.f32.xlu0 %v675
  %v677 = vpop.xlane.xlu0 %676
  %v678 = vsel %vm159, %v670, 0.0
  %679 = vadd.xlane.f32.xlu0 %v678
  %v680 = vpop.xlane.xlu0 %679
  %v681 = vsel %vm159, %v671, 0.0
  %682 = vadd.xlane.f32.xlu0 %v681
  %v683 = vpop.xlane.xlu0 %682
  %v684 = vmax.f32 %v674, 1e-16
  %v685 = vmax.f32 %v677, 1e-16
  %v686 = vmax.f32 %v680, 1e-16
  %v687 = vmax.f32 %v683, 1e-16
  %v688 = vrsqrt.pop %v684
  %v689 = vrsqrt.pop %v685
  %v690 = vrsqrt.pop %v686
  %v691 = vrsqrt.pop %v687
  %v692 = vld [vmem:[%s4] sm:$0xff]
  %v693 = vld [vmem:[%s4 + $0x8] sm:$0xff]
  %v694 = vld [vmem:[%s4 + $0x10] sm:$0xff]
  %v695 = vld [vmem:[%s4 + $0x18] sm:$0xff]
  %v696 = vmul.f32 %v688, %v692
  %v697 = vmul.f32 %v689, %v693
  %v698 = vmul.f32 %v690, %v694
  %v699 = vmul.f32 %v691, %v695
  %701 = vset.pattern.permute.xlu0 0
  %702 = vperm.xlu0 %701, %v696
  %v703 = vpop.permute.xlu0 %702
  %706 = vset.pattern.permute.xlu0 0
  %707 = vperm.xlu0 %706, %v697
  %v708 = vpop.permute.xlu0 %707
  %711 = vset.pattern.permute.xlu0 0
  %712 = vperm.xlu0 %711, %v698
  %v713 = vpop.permute.xlu0 %712
  %716 = vset.pattern.permute.xlu0 0
  %717 = vperm.xlu0 %716, %v699
  %v718 = vpop.permute.xlu0 %717
  %v720 = vmul.f32 %v654, %v703
  %v721 = vmul.f32 %v657, %v708
  %v722 = vmul.f32 %v662, %v713
  %v723 = vmul.f32 %v665, %v718
  %v724 = vpack.c.bf16 %v721, %v720
  %v725 = vpack.c.bf16 %v723, %v722
  %v726 = vpack.c.bf16 %v318, %v315
  %v727 = vpack.c.bf16 %v326, %v323
  %v728 = vpack.c.bf16 %v334, %v331
  %v729 = vpack.c.bf16 %v342, %v339
  %v730 = vpack.c.bf16 %v350, %v347
  %v731 = vpack.c.bf16 %v358, %v355
  %v732 = vpack.c.bf16 %v366, %v363
  %v733 = vpack.c.bf16 %v374, %v371
  %v734 = vpack.c.bf16 %v382, %v379
  %v735 = vpack.c.bf16 %v390, %v387
  %v736 = vpack.c.bf16 %v398, %v395
  %v737 = vpack.c.bf16 %v406, %v403
  %v738 = vpack.c.bf16 %v414, %v411
  %v739 = vpack.c.bf16 %v422, %v419
  %v740 = vpack.c.bf16 %v430, %v427
  %v741 = vpack.c.bf16 %v438, %v435
  %v742 = vpack.c.bf16 %v446, %v443
  %v743 = vpack.c.bf16 %v454, %v451
  %v744 = vpack.c.bf16 %v462, %v459
  %v745 = vpack.c.bf16 %v470, %v467
  %v746 = vpack.c.bf16 %v478, %v475
  %v747 = vpack.c.bf16 %v486, %v483
  %v748 = vpack.c.bf16 %v494, %v491
  %v749 = vpack.c.bf16 %v502, %v499
  %v750 = vpack.c.bf16 %v510, %v507
  %v751 = vpack.c.bf16 %v518, %v515
  %v752 = vpack.c.bf16 %v526, %v523
  %v753 = vpack.c.bf16 %v534, %v531
  %v754 = vpack.c.bf16 %v542, %v539
  %v755 = vpack.c.bf16 %v550, %v547
  %v756 = vpack.c.bf16 %v558, %v555
  %v757 = vpack.c.bf16 %v566, %v563
  %v758 = vpack.c.bf16 %v574, %v571
  %v759 = vpack.c.bf16 %v582, %v579
  %v760 = vpack.c.bf16 %v590, %v587
  %v761 = vpack.c.bf16 %v598, %v595
  %v763 = vsel %vm159, %v724, 0
  %v766 = vsel %vm159, %v725, 0
  %v769 = vsel %vm159, %v726, 0
  %v772 = vsel %vm159, %v727, 0
  %v775 = vsel %vm159, %v728, 0
  %v778 = vsel %vm159, %v729, 0
  %v781 = vsel %vm159, %v730, 0
  %v784 = vsel %vm159, %v731, 0
  %v787 = vsel %vm159, %v732, 0
  %v790 = vsel %vm159, %v733, 0
  %v793 = vsel %vm159, %v734, 0
  %v796 = vsel %vm159, %v735, 0
  %v799 = vsel %vm159, %v736, 0
  %v802 = vsel %vm159, %v737, 0
  %v805 = vsel %vm159, %v738, 0
  %v808 = vsel %vm159, %v739, 0
  %v811 = vsel %vm159, %v740, 0
  %v814 = vsel %vm159, %v741, 0
  %v817 = vsel %vm159, %v742, 0
  %v820 = vsel %vm159, %v743, 0
  %v823 = vsel %vm159, %v744, 0
  %v826 = vsel %vm159, %v745, 0
  %v829 = vsel %vm159, %v746, 0
  %v832 = vsel %vm159, %v747, 0
  %v835 = vsel %vm159, %v748, 0
  %v838 = vsel %vm159, %v749, 0
  %v841 = vsel %vm159, %v750, 0
  %v844 = vsel %vm159, %v751, 0
  %v847 = vsel %vm159, %v752, 0
  %v850 = vsel %vm159, %v753, 0
  %v853 = vsel %vm159, %v754, 0
  %v856 = vsel %vm159, %v755, 0
  %v859 = vsel %vm159, %v756, 0
  %v862 = vsel %vm159, %v757, 0
  %v865 = vsel %vm159, %v758, 0
  %v868 = vsel %vm159, %v759, 0
  %v871 = vsel %vm159, %v760, 0
  %v874 = vsel %vm159, %v761, 0
  %876 = vmatprep.subr.bf16.mxu0 0
  %877 = vmatpush1.bf16.xpose.msra.mxu0 %v769
  %878 = vmatprep.subr.bf16.mxu0 0
  %879 = vmatpush1.bf16.xpose.msra.mxu0 %v772
  %880 = vmatprep.subr.bf16.mxu0 0
  %881 = vmatpush1.bf16.xpose.msra.mxu0 %v775
  %882 = vmatprep.subr.bf16.mxu0 0
  %883 = vmatpush1.bf16.xpose.msra.mxu0 %v778
  %884 = vmatprep.subr.bf16.mxu0 0
  %885 = vmatpush1.bf16.xpose.msra.mxu0 %v781
  %886 = vmatprep.subr.bf16.mxu0 0
  %887 = vmatpush1.bf16.xpose.msra.mxu0 %v784
  %888 = vmatprep.subr.bf16.mxu0 0
  %889 = vmatpush1.bf16.xpose.msra.mxu0 %v787
  %890 = vmatprep.subr.bf16.mxu0 0
  %891 = vmatpush1.bf16.xpose.msra.mxu0 %v790
  %892 = vmatprep.subr.bf16.mxu0 0
  %893 = vmatpush1.bf16.xpose.msra.mxu0 %v793
  %894 = vmatprep.subr.bf16.mxu0 0
  %895 = vmatpush1.bf16.xpose.msra.mxu0 %v796
  %896 = vmatprep.subr.bf16.mxu0 0
  %897 = vmatpush1.bf16.xpose.msra.mxu0 %v799
  %898 = vmatprep.subr.bf16.mxu0 0
  %899 = vmatpush1.bf16.xpose.msra.mxu0 %v802
  %900 = vmatprep.subr.bf16.mxu0 0
  %901 = vmatpush1.bf16.xpose.msra.mxu0 %v805
  %902 = vmatprep.subr.bf16.mxu0 0
  %903 = vmatpush1.bf16.xpose.msra.mxu0 %v808
  %904 = vmatprep.subr.bf16.mxu0 0
  %905 = vmatpush1.bf16.xpose.msra.mxu0 %v811
  %906 = vmatprep.subr.bf16.mxu0 0
  %907 = vmatpush1.bf16.xpose.msra.mxu0 %v814
  %908 = vmatprep.mubr.bf16.mxu0 0
  %909 = vmatmul.mubr.bf16.gmra.mrb[0].mxu0 %v763
  %v910 = vpop.f32.mrb[0].mxu0
  %v911 = vadd.f32 0.0, %v910
  %v912 = vpop.f32.mrb[0].mxu0
  %v913 = vadd.f32 0.0, %v912
  %v914 = vpop.f32.mrb[0].mxu0
  %v915 = vadd.f32 0.0, %v914
  %v916 = vpop.f32.mrb[0].mxu0
  %v917 = vadd.f32 0.0, %v916
  %918 = vmatprep.mubr.bf16.mxu0 0
  %919 = vmatmul.mubr.bf16.gmra.mrb[0].mxu0 %v766
  %v920 = vpop.f32.mrb[0].mxu0
  %v921 = vadd.f32 0.0, %v920
  %v922 = vpop.f32.mrb[0].mxu0
  %v923 = vadd.f32 0.0, %v922
  %v924 = vpop.f32.mrb[0].mxu0
  %v925 = vadd.f32 0.0, %v924
  %v926 = vpop.f32.mrb[0].mxu0
  %v927 = vadd.f32 0.0, %v926
  %928 = vdwg.mxu0
  %929 = vmatprep.subr.bf16.mxu0 0
  %930 = vmatpush1.bf16.xpose.msra.mxu0 %v817
  %931 = vmatprep.subr.bf16.mxu0 0
  %932 = vmatpush1.bf16.xpose.msra.mxu0 %v820
  %933 = vmatprep.subr.bf16.mxu0 0
  %934 = vmatpush1.bf16.xpose.msra.mxu0 %v823
  %935 = vmatprep.subr.bf16.mxu0 0
  %936 = vmatpush1.bf16.xpose.msra.mxu0 %v826
  %937 = vmatprep.subr.bf16.mxu0 0
  %938 = vmatpush1.bf16.xpose.msra.mxu0 %v829
  %939 = vmatprep.subr.bf16.mxu0 0
  %940 = vmatpush1.bf16.xpose.msra.mxu0 %v832
  %941 = vmatprep.subr.bf16.mxu0 0
  %942 = vmatpush1.bf16.xpose.msra.mxu0 %v835
  %943 = vmatprep.subr.bf16.mxu0 0
  %944 = vmatpush1.bf16.xpose.msra.mxu0 %v838
  %945 = vmatprep.subr.bf16.mxu0 0
  %946 = vmatpush1.bf16.xpose.msra.mxu0 %v841
  %947 = vmatprep.subr.bf16.mxu0 0
  %948 = vmatpush1.bf16.xpose.msra.mxu0 %v844
  %949 = vmatprep.subr.bf16.mxu0 0
  %950 = vmatpush1.bf16.xpose.msra.mxu0 %v847
  %951 = vmatprep.subr.bf16.mxu0 0
  %952 = vmatpush1.bf16.xpose.msra.mxu0 %v850
  %953 = vmatprep.subr.bf16.mxu0 0
  %954 = vmatpush1.bf16.xpose.msra.mxu0 %v853
  %955 = vmatprep.subr.bf16.mxu0 0
  %956 = vmatpush1.bf16.xpose.msra.mxu0 %v856
  %957 = vmatprep.subr.bf16.mxu0 0
  %958 = vmatpush1.bf16.xpose.msra.mxu0 %v859
  %959 = vmatprep.subr.bf16.mxu0 0
  %960 = vmatpush1.bf16.xpose.msra.mxu0 %v862
  %961 = vmatprep.mubr.bf16.mxu0 0
  %962 = vmatmul.mubr.bf16.gmra.mrb[0].mxu0 %v763
  %v963 = vpop.f32.mrb[0].mxu0
  %v964 = vadd.f32 0.0, %v963
  %v965 = vpop.f32.mrb[0].mxu0
  %v966 = vadd.f32 0.0, %v965
  %v967 = vpop.f32.mrb[0].mxu0
  %v968 = vadd.f32 0.0, %v967
  %v969 = vpop.f32.mrb[0].mxu0
  %v970 = vadd.f32 0.0, %v969
  %971 = vmatprep.mubr.bf16.mxu0 0
  %972 = vmatmul.mubr.bf16.gmra.mrb[0].mxu0 %v766
  %v973 = vpop.f32.mrb[0].mxu0
  %v974 = vadd.f32 0.0, %v973
  %v975 = vpop.f32.mrb[0].mxu0
  %v976 = vadd.f32 0.0, %v975
  %v977 = vpop.f32.mrb[0].mxu0
  %v978 = vadd.f32 0.0, %v977
  %v979 = vpop.f32.mrb[0].mxu0
  %v980 = vadd.f32 0.0, %v979
  %981 = vdwg.mxu0
  %982 = vmatprep.subr.bf16.mxu0 0
  %983 = vmatpush1.bf16.xpose.msra.mxu0 %v865
  %984 = vmatprep.subr.bf16.mxu0 0
  %985 = vmatpush1.bf16.xpose.msra.mxu0 %v868
  %986 = vmatprep.subr.bf16.mxu0 0
  %987 = vmatpush1.bf16.xpose.msra.mxu0 %v871
  %988 = vmatprep.subr.bf16.mxu0 0
  %989 = vmatpush1.bf16.xpose.msra.mxu0 %v874
  %990 = vmatprep.subr.bf16.mxu0 0
  %991 = vmatpush1.bf16.xpose.msra.mxu0 0
  %992 = vmatprep.subr.bf16.mxu0 0
  %993 = vmatpush1.bf16.xpose.msra.mxu0 0
  %994 = vmatprep.subr.bf16.mxu0 0
  %995 = vmatpush1.bf16.xpose.msra.mxu0 0
  %996 = vmatprep.subr.bf16.mxu0 0
  %997 = vmatpush1.bf16.xpose.msra.mxu0 0
  %998 = vmatprep.subr.bf16.mxu0 0
  %999 = vmatpush1.bf16.xpose.msra.mxu0 0
  %1000 = vmatprep.subr.bf16.mxu0 0
  %1001 = vmatpush1.bf16.xpose.msra.mxu0 0
  %1002 = vmatprep.subr.bf16.mxu0 0
  %1003 = vmatpush1.bf16.xpose.msra.mxu0 0
  %1004 = vmatprep.subr.bf16.mxu0 0
  %1005 = vmatpush1.bf16.xpose.msra.mxu0 0
  %1006 = vmatprep.subr.bf16.mxu0 0
  %1007 = vmatpush1.bf16.xpose.msra.mxu0 0
  %1008 = vmatprep.subr.bf16.mxu0 0
  %1009 = vmatpush1.bf16.xpose.msra.mxu0 0
  %1010 = vmatprep.subr.bf16.mxu0 0
  %1011 = vmatpush1.bf16.xpose.msra.mxu0 0
  %1012 = vmatprep.subr.bf16.mxu0 0
  %1013 = vmatpush1.bf16.xpose.msra.mxu0 0
  %1014 = vmatprep.mubr.bf16.mxu0 0
  %1015 = vmatmul.mubr.bf16.gmra.mrb[0].mxu0 %v763
  %v1016 = vpop.f32.mrb[0].mxu0
  %v1017 = vadd.f32 0.0, %v1016
  %v1018 = vpop.f32.mrb[0].mxu0
  %v1019 = vpop.f32.mrb[0].mxu0
  %v1020 = vadd.f32 0.0, %v1019
  %v1021 = vpop.f32.mrb[0].mxu0
  %1022 = vmatprep.mubr.bf16.mxu0 0
  %1023 = vmatmul.mubr.bf16.gmra.mrb[0].mxu0 %v766
  %v1024 = vpop.f32.mrb[0].mxu0
  %v1025 = vadd.f32 0.0, %v1024
  %v1026 = vpop.f32.mrb[0].mxu0
  %v1027 = vpop.f32.mrb[0].mxu0
  %v1028 = vadd.f32 0.0, %v1027
  %v1029 = vpop.f32.mrb[0].mxu0
  %1030 = vdwg.mxu0
  %v1031 = vmax.f32 %v911, %v915
  %v1032 = vmax.f32 %v1031, %v921
  %v1033 = vmax.f32 %v1032, %v925
  %v1034 = vrot.slane %v1033, 4
  %v1035 = vmax.f32 %v1033, %v1034
  %v1036 = vrot.slane %v1035, 2
  %v1037 = vmax.f32 %v1035, %v1036
  %v1038 = vrot.slane %v1037, 1
  %v1039 = vmax.f32 %v1037, %v1038
  %v1040 = vmax.f32 %v913, %v917
  %v1041 = vmax.f32 %v1040, %v923
  %v1042 = vmax.f32 %v1041, %v927
  %v1043 = vrot.slane %v1042, 4
  %v1044 = vmax.f32 %v1042, %v1043
  %v1045 = vrot.slane %v1044, 2
  %v1046 = vmax.f32 %v1044, %v1045
  %v1047 = vrot.slane %v1046, 1
  %v1048 = vmax.f32 %v1046, %v1047
  %v1049 = vmax.f32 %v964, %v968
  %v1050 = vmax.f32 %v1049, %v974
  %v1051 = vmax.f32 %v1050, %v978
  %v1052 = vrot.slane %v1051, 4
  %v1053 = vmax.f32 %v1051, %v1052
  %v1054 = vrot.slane %v1053, 2
  %v1055 = vmax.f32 %v1053, %v1054
  %v1056 = vrot.slane %v1055, 1
  %v1057 = vmax.f32 %v1055, %v1056
  %v1058 = vmax.f32 %v966, %v970
  %v1059 = vmax.f32 %v1058, %v976
  %v1060 = vmax.f32 %v1059, %v980
  %v1061 = vrot.slane %v1060, 4
  %v1062 = vmax.f32 %v1060, %v1061
  %v1063 = vrot.slane %v1062, 2
  %v1064 = vmax.f32 %v1062, %v1063
  %v1065 = vrot.slane %v1064, 1
  %v1066 = vmax.f32 %v1064, %v1065
  %v1067 = vsel %vm159, %v1017, -inf
  %v1068 = vsel %vm159, %v1020, -inf
  %v1069 = vmax.f32 %v1067, %v1068
  %v1070 = vsel %vm159, %v1025, -inf
  %v1071 = vmax.f32 %v1069, %v1070
  %v1072 = vsel %vm159, %v1028, -inf
  %v1073 = vmax.f32 %v1071, %v1072
  %v1074 = vrot.slane %v1073, 4
  %v1075 = vmax.f32 %v1073, %v1074
  %v1076 = vrot.slane %v1075, 2
  %v1077 = vmax.f32 %v1075, %v1076
  %v1078 = vrot.slane %v1077, 1
  %v1079 = vmax.f32 %v1077, %v1078
  %v1080 = vmul.f32 %v315, %v315
  %v1081 = vmul.f32 %v318, %v318
  %v1082 = vmul.f32 %v323, %v323
  %v1083 = vmul.f32 %v326, %v326
  %v1084 = vmul.f32 %v331, %v331
  %v1085 = vmul.f32 %v334, %v334
  %v1086 = vmul.f32 %v339, %v339
  %v1087 = vmul.f32 %v342, %v342
  %v1088 = vmul.f32 %v347, %v347
  %v1089 = vmul.f32 %v350, %v350
  %v1090 = vmul.f32 %v355, %v355
  %v1091 = vmul.f32 %v358, %v358
  %v1092 = vmul.f32 %v363, %v363
  %v1093 = vmul.f32 %v366, %v366
  %v1094 = vmul.f32 %v371, %v371
  %v1095 = vmul.f32 %v374, %v374
  %v1096 = vmul.f32 %v379, %v379
  %v1097 = vmul.f32 %v382, %v382
  %v1098 = vmul.f32 %v387, %v387
  %v1099 = vmul.f32 %v390, %v390
  %v1100 = vmul.f32 %v395, %v395
  %v1101 = vmul.f32 %v398, %v398
  %v1102 = vmul.f32 %v403, %v403
  %v1103 = vmul.f32 %v406, %v406
  %v1104 = vmul.f32 %v411, %v411
  %v1105 = vmul.f32 %v414, %v414
  %v1106 = vmul.f32 %v419, %v419
  %v1107 = vmul.f32 %v422, %v422
  %v1108 = vmul.f32 %v427, %v427
  %v1109 = vmul.f32 %v430, %v430
  %v1110 = vmul.f32 %v435, %v435
  %v1111 = vmul.f32 %v438, %v438
  %v1112 = vmul.f32 %v443, %v443
  %v1113 = vmul.f32 %v446, %v446
  %v1114 = vmul.f32 %v451, %v451
  %v1115 = vmul.f32 %v454, %v454
  %v1116 = vmul.f32 %v459, %v459
  %v1117 = vmul.f32 %v462, %v462
  %v1118 = vmul.f32 %v467, %v467
  %v1119 = vmul.f32 %v470, %v470
  %v1120 = vmul.f32 %v475, %v475
  %v1121 = vmul.f32 %v478, %v478
  %v1122 = vmul.f32 %v483, %v483
  %v1123 = vmul.f32 %v486, %v486
  %v1124 = vmul.f32 %v491, %v491
  %v1125 = vmul.f32 %v494, %v494
  %v1126 = vmul.f32 %v499, %v499
  %v1127 = vmul.f32 %v502, %v502
  %v1128 = vmul.f32 %v507, %v507
  %v1129 = vmul.f32 %v510, %v510
  %v1130 = vmul.f32 %v515, %v515
  %v1131 = vmul.f32 %v518, %v518
  %v1132 = vmul.f32 %v523, %v523
  %v1133 = vmul.f32 %v526, %v526
  %v1134 = vmul.f32 %v531, %v531
  %v1135 = vmul.f32 %v534, %v534
  %v1136 = vmul.f32 %v539, %v539
  %v1137 = vmul.f32 %v542, %v542
  %v1138 = vmul.f32 %v547, %v547
  %v1139 = vmul.f32 %v550, %v550
  %v1140 = vmul.f32 %v555, %v555
  %v1141 = vmul.f32 %v558, %v558
  %v1142 = vmul.f32 %v563, %v563
  %v1143 = vmul.f32 %v566, %v566
  %v1144 = vmul.f32 %v571, %v571
  %v1145 = vmul.f32 %v574, %v574
  %v1146 = vmul.f32 %v579, %v579
  %v1147 = vmul.f32 %v582, %v582
  %v1148 = vmul.f32 %v587, %v587
  %v1149 = vmul.f32 %v590, %v590
  %v1150 = vmul.f32 %v595, %v595
  %v1151 = vmul.f32 %v598, %v598
  %v1153 = vsel %vm159, 1.0, 0
  %v1156 = vsel %vm159, %v1080, 0
  %v1159 = vsel %vm159, %v1081, 0
  %v1162 = vsel %vm159, %v1082, 0
  %v1165 = vsel %vm159, %v1083, 0
  %v1168 = vsel %vm159, %v1084, 0
  %v1171 = vsel %vm159, %v1085, 0
  %v1174 = vsel %vm159, %v1086, 0
  %v1177 = vsel %vm159, %v1087, 0
  %v1180 = vsel %vm159, %v1088, 0
  %v1183 = vsel %vm159, %v1089, 0
  %v1186 = vsel %vm159, %v1090, 0
  %v1189 = vsel %vm159, %v1091, 0
  %v1192 = vsel %vm159, %v1092, 0
  %v1195 = vsel %vm159, %v1093, 0
  %v1198 = vsel %vm159, %v1094, 0
  %v1201 = vsel %vm159, %v1095, 0
  %v1204 = vsel %vm159, %v1096, 0
  %v1207 = vsel %vm159, %v1097, 0
  %v1210 = vsel %vm159, %v1098, 0
  %v1213 = vsel %vm159, %v1099, 0
  %v1216 = vsel %vm159, %v1100, 0
  %v1219 = vsel %vm159, %v1101, 0
  %v1222 = vsel %vm159, %v1102, 0
  %v1225 = vsel %vm159, %v1103, 0
  %v1228 = vsel %vm159, %v1104, 0
  %v1231 = vsel %vm159, %v1105, 0
  %v1234 = vsel %vm159, %v1106, 0
  %v1237 = vsel %vm159, %v1107, 0
  %v1240 = vsel %vm159, %v1108, 0
  %v1243 = vsel %vm159, %v1109, 0
  %v1246 = vsel %vm159, %v1110, 0
  %v1249 = vsel %vm159, %v1111, 0
  %v1252 = vsel %vm159, %v1112, 0
  %v1255 = vsel %vm159, %v1113, 0
  %v1258 = vsel %vm159, %v1114, 0
  %v1261 = vsel %vm159, %v1115, 0
  %v1264 = vsel %vm159, %v1116, 0
  %v1267 = vsel %vm159, %v1117, 0
  %v1270 = vsel %vm159, %v1118, 0
  %v1273 = vsel %vm159, %v1119, 0
  %v1276 = vsel %vm159, %v1120, 0
  %v1279 = vsel %vm159, %v1121, 0
  %v1282 = vsel %vm159, %v1122, 0
  %v1285 = vsel %vm159, %v1123, 0
  %v1288 = vsel %vm159, %v1124, 0
  %v1291 = vsel %vm159, %v1125, 0
  %v1294 = vsel %vm159, %v1126, 0
  %v1297 = vsel %vm159, %v1127, 0
  %v1300 = vsel %vm159, %v1128, 0
  %v1303 = vsel %vm159, %v1129, 0
  %v1306 = vsel %vm159, %v1130, 0
  %v1309 = vsel %vm159, %v1131, 0
  %v1312 = vsel %vm159, %v1132, 0
  %v1315 = vsel %vm159, %v1133, 0
  %v1318 = vsel %vm159, %v1134, 0
  %v1321 = vsel %vm159, %v1135, 0
  %v1324 = vsel %vm159, %v1136, 0
  %v1327 = vsel %vm159, %v1137, 0
  %v1330 = vsel %vm159, %v1138, 0
  %v1333 = vsel %vm159, %v1139, 0
  %v1336 = vsel %vm159, %v1140, 0
  %v1339 = vsel %vm159, %v1141, 0
  %v1342 = vsel %vm159, %v1142, 0
  %v1345 = vsel %vm159, %v1143, 0
  %v1348 = vsel %vm159, %v1144, 0
  %v1351 = vsel %vm159, %v1145, 0
  %v1354 = vsel %vm159, %v1146, 0
  %v1357 = vsel %vm159, %v1147, 0
  %v1360 = vsel %vm159, %v1148, 0
  %v1363 = vsel %vm159, %v1149, 0
  %v1366 = vsel %vm159, %v1150, 0
  %v1369 = vsel %vm159, %v1151, 0
  %1371 = vmatprep.subr.mxu0 0.0
  %1372 = vmatpush1.xpose.msra.mxu0 %v1156
  %1373 = vmatprep.subr.mxu0 0.0
  %1374 = vmatpush1.xpose.msra.mxu0 %v1159
  %1375 = vmatprep.subr.mxu0 0.0
  %1376 = vmatpush1.xpose.msra.mxu0 %v1162
  %1377 = vmatprep.subr.mxu0 0.0
  %1378 = vmatpush1.xpose.msra.mxu0 %v1165
  %1379 = vmatprep.subr.mxu0 0.0
  %1380 = vmatpush1.xpose.msra.mxu0 %v1168
  %1381 = vmatprep.subr.mxu0 0.0
  %1382 = vmatpush1.xpose.msra.mxu0 %v1171
  %1383 = vmatprep.subr.mxu0 0.0
  %1384 = vmatpush1.xpose.msra.mxu0 %v1174
  %1385 = vmatprep.subr.mxu0 0.0
  %1386 = vmatpush1.xpose.msra.mxu0 %v1177
  %1387 = vmatprep.subr.mxu0 0.0
  %1388 = vmatpush1.xpose.msra.mxu0 %v1180
  %1389 = vmatprep.subr.mxu0 0.0
  %1390 = vmatpush1.xpose.msra.mxu0 %v1183
  %1391 = vmatprep.subr.mxu0 0.0
  %1392 = vmatpush1.xpose.msra.mxu0 %v1186
  %1393 = vmatprep.subr.mxu0 0.0
  %1394 = vmatpush1.xpose.msra.mxu0 %v1189
  %1395 = vmatprep.subr.mxu0 0.0
  %1396 = vmatpush1.xpose.msra.mxu0 %v1192
  %1397 = vmatprep.subr.mxu0 0.0
  %1398 = vmatpush1.xpose.msra.mxu0 %v1195
  %1399 = vmatprep.subr.mxu0 0.0
  %1400 = vmatpush1.xpose.msra.mxu0 %v1198
  %1401 = vmatprep.subr.mxu0 0.0
  %1402 = vmatpush1.xpose.msra.mxu0 %v1201
  %1403 = vmatprep.subr.mxu0 0.0
  %1404 = vmatpush1.xpose.msra.mxu0 %v1204
  %1405 = vmatprep.subr.mxu0 0.0
  %1406 = vmatpush1.xpose.msra.mxu0 %v1207
  %1407 = vmatprep.subr.mxu0 0.0
  %1408 = vmatpush1.xpose.msra.mxu0 %v1210
  %1409 = vmatprep.subr.mxu0 0.0
  %1410 = vmatpush1.xpose.msra.mxu0 %v1213
  %1411 = vmatprep.subr.mxu0 0.0
  %1412 = vmatpush1.xpose.msra.mxu0 %v1216
  %1413 = vmatprep.subr.mxu0 0.0
  %1414 = vmatpush1.xpose.msra.mxu0 %v1219
  %1415 = vmatprep.subr.mxu0 0.0
  %1416 = vmatpush1.xpose.msra.mxu0 %v1222
  %1417 = vmatprep.subr.mxu0 0.0
  %1418 = vmatpush1.xpose.msra.mxu0 %v1225
  %1419 = vmatprep.subr.mxu0 0.0
  %1420 = vmatpush1.xpose.msra.mxu0 %v1228
  %1421 = vmatprep.subr.mxu0 0.0
  %1422 = vmatpush1.xpose.msra.mxu0 %v1231
  %1423 = vmatprep.subr.mxu0 0.0
  %1424 = vmatpush1.xpose.msra.mxu0 %v1234
  %1425 = vmatprep.subr.mxu0 0.0
  %1426 = vmatpush1.xpose.msra.mxu0 %v1237
  %1427 = vmatprep.subr.mxu0 0.0
  %1428 = vmatpush1.xpose.msra.mxu0 %v1240
  %1429 = vmatprep.subr.mxu0 0.0
  %1430 = vmatpush1.xpose.msra.mxu0 %v1243
  %1431 = vmatprep.subr.mxu0 0.0
  %1432 = vmatpush1.xpose.msra.mxu0 %v1246
  %1433 = vmatprep.subr.mxu0 0.0
  %1434 = vmatpush1.xpose.msra.mxu0 %v1249
  %1435 = vmatprep.mubr.f32.mxu0 0.0
  %1436 = vmatmul.mubr.f32.gmra.mrb[0].mxu0 %v1153
  %v1437 = vpop.f32.mrb[0].mxu0
  %v1438 = vadd.f32 0.0, %v1437
  %v1439 = vpop.f32.mrb[0].mxu0
  %v1440 = vadd.f32 0.0, %v1439
  %1441 = vdwg.mxu0
  %1442 = vmatprep.subr.mxu0 0.0
  %1443 = vmatpush1.xpose.msra.mxu0 %v1252
  %1444 = vmatprep.subr.mxu0 0.0
  %1445 = vmatpush1.xpose.msra.mxu0 %v1255
  %1446 = vmatprep.subr.mxu0 0.0
  %1447 = vmatpush1.xpose.msra.mxu0 %v1258
  %1448 = vmatprep.subr.mxu0 0.0
  %1449 = vmatpush1.xpose.msra.mxu0 %v1261
  %1450 = vmatprep.subr.mxu0 0.0
  %1451 = vmatpush1.xpose.msra.mxu0 %v1264
  %1452 = vmatprep.subr.mxu0 0.0
  %1453 = vmatpush1.xpose.msra.mxu0 %v1267
  %1454 = vmatprep.subr.mxu0 0.0
  %1455 = vmatpush1.xpose.msra.mxu0 %v1270
  %1456 = vmatprep.subr.mxu0 0.0
  %1457 = vmatpush1.xpose.msra.mxu0 %v1273
  %1458 = vmatprep.subr.mxu0 0.0
  %1459 = vmatpush1.xpose.msra.mxu0 %v1276
  %1460 = vmatprep.subr.mxu0 0.0
  %1461 = vmatpush1.xpose.msra.mxu0 %v1279
  %1462 = vmatprep.subr.mxu0 0.0
  %1463 = vmatpush1.xpose.msra.mxu0 %v1282
  %1464 = vmatprep.subr.mxu0 0.0
  %1465 = vmatpush1.xpose.msra.mxu0 %v1285
  %1466 = vmatprep.subr.mxu0 0.0
  %1467 = vmatpush1.xpose.msra.mxu0 %v1288
  %1468 = vmatprep.subr.mxu0 0.0
  %1469 = vmatpush1.xpose.msra.mxu0 %v1291
  %1470 = vmatprep.subr.mxu0 0.0
  %1471 = vmatpush1.xpose.msra.mxu0 %v1294
  %1472 = vmatprep.subr.mxu0 0.0
  %1473 = vmatpush1.xpose.msra.mxu0 %v1297
  %1474 = vmatprep.subr.mxu0 0.0
  %1475 = vmatpush1.xpose.msra.mxu0 %v1300
  %1476 = vmatprep.subr.mxu0 0.0
  %1477 = vmatpush1.xpose.msra.mxu0 %v1303
  %1478 = vmatprep.subr.mxu0 0.0
  %1479 = vmatpush1.xpose.msra.mxu0 %v1306
  %1480 = vmatprep.subr.mxu0 0.0
  %1481 = vmatpush1.xpose.msra.mxu0 %v1309
  %1482 = vmatprep.subr.mxu0 0.0
  %1483 = vmatpush1.xpose.msra.mxu0 %v1312
  %1484 = vmatprep.subr.mxu0 0.0
  %1485 = vmatpush1.xpose.msra.mxu0 %v1315
  %1486 = vmatprep.subr.mxu0 0.0
  %1487 = vmatpush1.xpose.msra.mxu0 %v1318
  %1488 = vmatprep.subr.mxu0 0.0
  %1489 = vmatpush1.xpose.msra.mxu0 %v1321
  %1490 = vmatprep.subr.mxu0 0.0
  %1491 = vmatpush1.xpose.msra.mxu0 %v1324
  %1492 = vmatprep.subr.mxu0 0.0
  %1493 = vmatpush1.xpose.msra.mxu0 %v1327
  %1494 = vmatprep.subr.mxu0 0.0
  %1495 = vmatpush1.xpose.msra.mxu0 %v1330
  %1496 = vmatprep.subr.mxu0 0.0
  %1497 = vmatpush1.xpose.msra.mxu0 %v1333
  %1498 = vmatprep.subr.mxu0 0.0
  %1499 = vmatpush1.xpose.msra.mxu0 %v1336
  %1500 = vmatprep.subr.mxu0 0.0
  %1501 = vmatpush1.xpose.msra.mxu0 %v1339
  %1502 = vmatprep.subr.mxu0 0.0
  %1503 = vmatpush1.xpose.msra.mxu0 %v1342
  %1504 = vmatprep.subr.mxu0 0.0
  %1505 = vmatpush1.xpose.msra.mxu0 %v1345
  %1506 = vmatprep.mubr.f32.mxu0 0.0
  %1507 = vmatmul.mubr.f32.gmra.mrb[0].mxu0 %v1153
  %v1508 = vpop.f32.mrb[0].mxu0
  %v1509 = vadd.f32 0.0, %v1508
  %v1510 = vpop.f32.mrb[0].mxu0
  %v1511 = vadd.f32 0.0, %v1510
  %1512 = vdwg.mxu0
  %1513 = vmatprep.subr.mxu0 0.0
  %1514 = vmatpush1.xpose.msra.mxu0 %v1348
  %1515 = vmatprep.subr.mxu0 0.0
  %1516 = vmatpush1.xpose.msra.mxu0 %v1351
  %1517 = vmatprep.subr.mxu0 0.0
  %1518 = vmatpush1.xpose.msra.mxu0 %v1354
  %1519 = vmatprep.subr.mxu0 0.0
  %1520 = vmatpush1.xpose.msra.mxu0 %v1357
  %1521 = vmatprep.subr.mxu0 0.0
  %1522 = vmatpush1.xpose.msra.mxu0 %v1360
  %1523 = vmatprep.subr.mxu0 0.0
  %1524 = vmatpush1.xpose.msra.mxu0 %v1363
  %1525 = vmatprep.subr.mxu0 0.0
  %1526 = vmatpush1.xpose.msra.mxu0 %v1366
  %1527 = vmatprep.subr.mxu0 0.0
  %1528 = vmatpush1.xpose.msra.mxu0 %v1369
  %1529 = vmatprep.subr.mxu0 0.0
  %1530 = vmatpush1.xpose.msra.mxu0 0.0
  %1531 = vmatprep.subr.mxu0 0.0
  %1532 = vmatpush1.xpose.msra.mxu0 0.0
  %1533 = vmatprep.subr.mxu0 0.0
  %1534 = vmatpush1.xpose.msra.mxu0 0.0
  %1535 = vmatprep.subr.mxu0 0.0
  %1536 = vmatpush1.xpose.msra.mxu0 0.0
  %1537 = vmatprep.subr.mxu0 0.0
  %1538 = vmatpush1.xpose.msra.mxu0 0.0
  %1539 = vmatprep.subr.mxu0 0.0
  %1540 = vmatpush1.xpose.msra.mxu0 0.0
  %1541 = vmatprep.subr.mxu0 0.0
  %1542 = vmatpush1.xpose.msra.mxu0 0.0
  %1543 = vmatprep.subr.mxu0 0.0
  %1544 = vmatpush1.xpose.msra.mxu0 0.0
  %1545 = vmatprep.subr.mxu0 0.0
  %1546 = vmatpush1.xpose.msra.mxu0 0.0
  %1547 = vmatprep.subr.mxu0 0.0
  %1548 = vmatpush1.xpose.msra.mxu0 0.0
  %1549 = vmatprep.subr.mxu0 0.0
  %1550 = vmatpush1.xpose.msra.mxu0 0.0
  %1551 = vmatprep.subr.mxu0 0.0
  %1552 = vmatpush1.xpose.msra.mxu0 0.0
  %1553 = vmatprep.subr.mxu0 0.0
  %1554 = vmatpush1.xpose.msra.mxu0 0.0
  %1555 = vmatprep.subr.mxu0 0.0
  %1556 = vmatpush1.xpose.msra.mxu0 0.0
  %1557 = vmatprep.subr.mxu0 0.0
  %1558 = vmatpush1.xpose.msra.mxu0 0.0
  %1559 = vmatprep.subr.mxu0 0.0
  %1560 = vmatpush1.xpose.msra.mxu0 0.0
  %1561 = vmatprep.subr.mxu0 0.0
  %1562 = vmatpush1.xpose.msra.mxu0 0.0
  %1563 = vmatprep.subr.mxu0 0.0
  %1564 = vmatpush1.xpose.msra.mxu0 0.0
  %1565 = vmatprep.subr.mxu0 0.0
  %1566 = vmatpush1.xpose.msra.mxu0 0.0
  %1567 = vmatprep.subr.mxu0 0.0
  %1568 = vmatpush1.xpose.msra.mxu0 0.0
  %1569 = vmatprep.subr.mxu0 0.0
  %1570 = vmatpush1.xpose.msra.mxu0 0.0
  %1571 = vmatprep.subr.mxu0 0.0
  %1572 = vmatpush1.xpose.msra.mxu0 0.0
  %1573 = vmatprep.subr.mxu0 0.0
  %1574 = vmatpush1.xpose.msra.mxu0 0.0
  %1575 = vmatprep.subr.mxu0 0.0
  %1576 = vmatpush1.xpose.msra.mxu0 0.0
  %1577 = vmatprep.mubr.f32.mxu0 0.0
  %1578 = vmatmul.mubr.f32.gmra.mrb[0].mxu0 %v1153
  %v1579 = vpop.f32.mrb[0].mxu0
  %v1580 = vadd.f32 0.0, %v1579
  %v1581 = vpop.f32.mrb[0].mxu0
  %1582 = vdwg.mxu0
  %v1583 = vmax.f32 %v1438, 1e-16
  %v1584 = vmax.f32 %v1440, 1e-16
  %v1585 = vmax.f32 %v1509, 1e-16
  %v1586 = vmax.f32 %v1511, 1e-16
  %v1587 = vmax.f32 %v1580, 1e-16
  %v1588 = vrsqrt.pop %v1583
  %v1589 = vrsqrt.pop %v1584
  %v1590 = vrsqrt.pop %v1585
  %v1591 = vrsqrt.pop %v1586
  %v1592 = vrsqrt.pop %v1587
  %v1593 = vmul.f32 %v1039, %v1588
  %v1594 = vmul.f32 %v1048, %v1589
  %v1595 = vmul.f32 %v1057, %v1590
  %v1596 = vmul.f32 %v1066, %v1591
  %v1597 = vmul.f32 %v1079, %v1592
  %v1598 = vmul.f32 %v1593, 20.0
  %v1599 = vmul.f32 %v1594, 20.0
  %v1600 = vmul.f32 %v1595, 20.0
  %v1601 = vmul.f32 %v1596, 20.0
  %v1602 = vmul.f32 %v1597, 20.0
  %v1608 = vcombine.low %v1598, %v1599
  %v1609 = vcombine.low %v1600, %v1601
  %v1611 = vunpack.c.l.s4 1966171168
  %v1612 = vunpack.c.0.s8 %v1611
  %v1613 = vlaneseq
  %v1614 = vshrl.u32 %v1613, 7
  %v1615 = vsub.s32 %v1612, %v1614
  %v1616 = vrot.slane %v1608, %v1615
  %v1618 = vunpack.c.l.s4 1966171168
  %v1619 = vunpack.c.0.s8 %v1618
  %v1620 = vlaneseq
  %v1621 = vshrl.u32 %v1620, 7
  %v1622 = vsub.s32 %v1619, %v1621
  %v1623 = vrot.slane %v1609, %v1622
  %v1625 = vunpack.c.l.s4 1966171168
  %v1626 = vunpack.c.0.s8 %v1625
  %v1627 = vlaneseq
  %v1628 = vshrl.u32 %v1627, 7
  %v1629 = vsub.s32 %v1626, %v1628
  %v1630 = vrot.slane %v1602, %v1629
  %v1631 = vcombine.low %v1616, %v1623
  %v1633 = vunpack.c.l.s4 1966171168
  %v1634 = vunpack.c.0.s8 %v1633
  %v1635 = vlaneseq
  %v1636 = vshrl.u32 %v1635, 7
  %v1637 = vsub.s32 %v1634, %v1636
  %v1638 = vrot.slane %v1631, %v1637
  %v1640 = vunpack.c.l.s4 1966171168
  %v1641 = vunpack.c.0.s8 %v1640
  %v1642 = vlaneseq
  %v1643 = vshrl.u32 %v1642, 7
  %v1644 = vsub.s32 %v1641, %v1643
  %v1645 = vrot.slane %v1630, %v1644
  %v1646 = vcombine.low %v1638, %v1645
  %v1648 = vlaneseq
  %vm1649 = vcmp.ge.s32.totalorder %v1648, 0
  %vm1650 = vcmp.lt.s32.totalorder %v1648, 576
  %vm1651 = vmand %vm1649, %vm1650
  %1652 = vst.msk [vmem:[%s5] sm:$0x1f] %vm1651, %v1646
  // Predicated region
  $region22: #{_router_select.1} parent=0 // pred_check
    _
  $region23: #{_router_select.1} parent=0 // pred_check_branch
    %1654 = sbr.rel (0) target = $region25
  $region24: #{_router_select.1} parent=0 // pred_region
    _
  $region25: #{_router_select.1} parent=0 // pred_fallthru
    _
  // Predicated region
  $region26: #{_router_select.1} parent=0 // pred_check
    _
  $region27: #{_router_select.1} parent=0 // pred_check_branch
    %1656 = sbr.rel (0) target = $region29
  $region28: #{_router_select.1} parent=0 // pred_region
    _
  $region29: #{_router_select.1} parent=0 // pred_fallthru
    _

</llo_original>
